<compile_context>
chip_gen: v7x
topology: tpu7x:2x2x1
jax: 0.10.0
libtpu: 0.0.40
codegen_flags: <defaults>
</compile_context>

<pallas_src>
import functools

import jax
import jax.numpy as jnp
from jax import lax
from jax.experimental import pallas as pl
from jax.experimental.pallas import tpu as pltpu

IGNORE_INDEX = 0       # matches the module default (ignore_index=0, NOT -100)
MATCH_WEIGHT = 1.0


def _round_up(x, m):
    return ((x + m - 1) // m) * m


@functools.lru_cache(maxsize=None)
def _gen_vmem_params():
    """Per-generation block-byte budgets and scoped-VMEM limit."""
    cap = 64 << 20  # conservative (v7x-class) fallback
    try:
        info = pltpu.get_tpu_info()
        c = getattr(info, "vmem_capacity_bytes", None)
        if c:
            cap = int(c)
    except Exception:
        pass
    if cap >= (96 << 20):      # v5e / v6e class: 128 MiB physical VMEM
        return {"ce_block_bytes": 8 << 20,
                "mse_block_bytes": 8 << 20,
                "vmem_limit": 64 << 20}
    # v7x class: 64 MiB physical VMEM -> stay well under it
    return {"ce_block_bytes": 4 << 20,
            "mse_block_bytes": 4 << 20,
            "vmem_limit": 44 << 20}


# ----------------------------------------------------------------------------
# Cross-entropy: online logsumexp over vocab tiles, per-row nll + valid flag.
# ----------------------------------------------------------------------------
def _ce_kernel(logits_ref, tgt_ref, out_ref, m_ref, l_ref, p_ref,
               *, n_rows, row_tile, v_tile, tail_width):
    i = pl.program_id(0)          # row-block index ("parallel")
    j = pl.program_id(1)          # vocab-block index ("arbitrary", innermost)
    n_last = pl.num_programs(1) - 1

    @pl.when(j == 0)
    def _init():
        m_ref[...] = jnp.full_like(m_ref, -jnp.inf)
        l_ref[...] = jnp.zeros_like(l_ref)
        p_ref[...] = jnp.zeros_like(p_ref)

    logits = logits_ref[...].astype(jnp.float32)             # (row_tile, v_tile)
    tgt = tgt_ref[...]                                        # (row_tile, 1) int32

    # j-invariant lane iota; the target is shifted into tile-local coordinates
    # instead of adding j*v_tile to every element of the iota.
    col = lax.broadcasted_iota(jnp.int32, logits.shape, 1)
    rel_tgt = tgt - j * v_tile                                # (row_tile, 1)

    def update(x):
        # Online logsumexp (running max / scaled sum per row).
        m_old = m_ref[...]
        m_new = jnp.maximum(m_old, jnp.max(x, axis=-1, keepdims=True))
        alpha = jnp.exp(m_old - m_new)
        l_ref[...] = alpha * l_ref[...] + jnp.sum(jnp.exp(x - m_new),
                                                  axis=-1, keepdims=True)
        m_ref[...] = m_new
        # Gather logits[row, tgt[row]]: the target column lives in exactly one
        # tile.  Reuses x (identical to the raw logit for any in-range target).
        p_ref[...] += jnp.sum(jnp.where(col == rel_tgt, x, 0.0),
                              axis=-1, keepdims=True)

    if tail_width:
        # Ragged vocab tail exists (V % v_tile != 0): mask it with -inf, but
        # only on the statically-last vocab block; interior blocks run the
        # cheap unmasked path.
        @pl.when(j != n_last)
        def _interior():
            update(logits)

        @pl.when(j == n_last)
        def _tail():
            update(jnp.where(col < tail_width, logits, -jnp.inf))
    else:
        update(logits)

    @pl.when(j == n_last)
    def _epilogue():
        # Mask the ragged row tail (unspecified data) and ignored targets.
        row = i * row_tile + lax.broadcasted_iota(jnp.int32, tgt.shape, 0)
        valid = (row < n_rows) & (tgt != IGNORE_INDEX)
        nll = m_ref[...] + jnp.log(l_ref[...]) - p_ref[...]
        out_ref[:, 0:1] = jnp.where(valid, nll, 0.0)          # select, not multiply
        out_ref[:, 1:2] = valid.astype(jnp.float32)


def _ce_pallas(logits_2d, targets_1d, *, v_tile_override=None):
    """Mean cross-entropy with ignore_index over (N, V) logits / (N,) targets.

    NOTE: if every target equals IGNORE_INDEX the result is NaN (0/0), which
    matches torch.nn.CrossEntropyLoss behaviour.
    """
    N, V = logits_2d.shape
    params = _gen_vmem_params()
    itemsize = jnp.dtype(logits_2d.dtype).itemsize

    row_tile = min(512, _round_up(N, 8))
    if N > 16:
        # keep >= 2 row blocks so the "parallel" axis can shard across v7x's 2 TCs
        row_tile = min(row_tile, _round_up(pl.cdiv(N, 2), 8))

    if v_tile_override is not None:
        v_tile = min(v_tile_override, V)
    else:
        v_tile = max(512, (params["ce_block_bytes"] // (row_tile * itemsize))
                     // 128 * 128)
    if V <= v_tile:
        v_tile = V
    tail_width = V % v_tile          # 0 -> no tail-mask code emitted at all

    n_row_blocks = pl.cdiv(N, row_tile)
    n_v_blocks = pl.cdiv(V, v_tile)
    tgt = targets_1d.astype(jnp.int32).reshape(N, 1)

    kernel = functools.partial(_ce_kernel, n_rows=N, row_tile=row_tile,
                               v_tile=v_tile, tail_width=tail_width)

    cost = pl.CostEstimate(flops=6 * N * V,
                           transcendentals=N * V,
                           bytes_accessed=N * V * itemsize + N * 4 + N * 2 * 4)

    out = pl.pallas_call(
        kernel,
        out_shape=jax.ShapeDtypeStruct((N, 2), jnp.float32),
        grid_spec=pltpu.PrefetchScalarGridSpec(
            num_scalar_prefetch=0,
            grid=(n_row_blocks, n_v_blocks),
            in_specs=[pl.BlockSpec((row_tile, v_tile), lambda i, j: (i, j)),
                      pl.BlockSpec((row_tile, 1), lambda i, j: (i, 0))],
            out_specs=pl.BlockSpec((row_tile, 2), lambda i, j: (i, 0)),
            scratch_shapes=[pltpu.VMEM((row_tile, 1), jnp.float32),
                            pltpu.VMEM((row_tile, 1), jnp.float32),
                            pltpu.VMEM((row_tile, 1), jnp.float32)],
        ),
        compiler_params=pltpu.CompilerParams(
            dimension_semantics=("parallel", "arbitrary"),
            vmem_limit_bytes=params["vmem_limit"]),
        cost_estimate=cost,
    )(logits_2d, tgt)

    # Tiny final reduction in plain JAX (N*8 bytes, negligible).
    sums = jnp.sum(out, axis=0)
    return sums[0] / sums[1]


# ----------------------------------------------------------------------------
# MSE: per-row-block sums of squared differences, mean taken outside.
# ----------------------------------------------------------------------------
def _mse_kernel(a_ref, b_ref, out_ref, *, n_rows, row_tile):
    i = pl.program_id(0)
    d = a_ref[...].astype(jnp.float32) - b_ref[...].astype(jnp.float32)
    sq = jnp.sum(d * d, axis=-1, keepdims=True)               # (row_tile, 1)
    row = i * row_tile + lax.broadcasted_iota(jnp.int32, sq.shape, 0)
    out_ref[...] = jnp.where(row < n_rows, sq, 0.0)           # mask ragged tail


def _lane_dense_pair(a, b):
    """Reshape both tensors to the widest lane-dense 2-D layout; if no clean
    reshape exists, zero-pad the flattened tensors to a 128-wide layout (zero
    padding in both operands contributes exactly 0 to the squared-diff sum)."""
    n = a.size
    af, bf = a.reshape(-1), b.reshape(-1)
    for lane in (1024, 512, 256, 128):
        if n % lane == 0:
            return af.reshape(-1, lane), bf.reshape(-1, lane)
    lane = 128
    pad = _round_up(n, lane) - n
    af = jnp.pad(af, (0, pad))
    bf = jnp.pad(bf, (0, pad))
    return af.reshape(-1, lane), bf.reshape(-1, lane)


def _mse_pallas(a, b):
    """Mean squared error over equal-shaped tensors."""
    assert a.shape == b.shape
    numel = a.size
    a2, b2 = _lane_dense_pair(a, b)
    M, C = a2.shape
    params = _gen_vmem_params()
    itemsize = jnp.dtype(a2.dtype).itemsize

    row_tile = max(8, (params["mse_block_bytes"] // (C * itemsize)) // 8 * 8)
    row_tile = min(row_tile, _round_up(M, 8))
    grid = (pl.cdiv(M, row_tile),)

    kernel = functools.partial(_mse_kernel, n_rows=M, row_tile=row_tile)
    cost = pl.CostEstimate(flops=3 * M * C, transcendentals=0,
                           bytes_accessed=2 * M * C * itemsize + M * 4)

    per_row = pl.pallas_call(
        kernel,
        out_shape=jax.ShapeDtypeStruct((M, 1), jnp.float32),
        grid_spec=pltpu.PrefetchScalarGridSpec(
            num_scalar_prefetch=0,
            grid=grid,
            in_specs=[pl.BlockSpec((row_tile, C), lambda i: (i, 0)),
                      pl.BlockSpec((row_tile, C), lambda i: (i, 0))],
            out_specs=pl.BlockSpec((row_tile, 1), lambda i: (i, 0)),
        ),
        compiler_params=pltpu.CompilerParams(
            dimension_semantics=("parallel",),
            vmem_limit_bytes=params["vmem_limit"]),
        cost_estimate=cost,
    )(a2, b2)
    return jnp.sum(per_row) / jnp.float32(numel)


# ----------------------------------------------------------------------------
# DualLoss forward:  CE(Xh) + CE(Xp) [+ CE(X_up)] [+ lambda * MSE(ctx_h, ctx_p)]
# ----------------------------------------------------------------------------
def dual_loss(logits_h, targets_h, logits_p, targets_p,
              logits_up=None, targets_up=None,
              context_h=None, context_p=None,
              match_weight=MATCH_WEIGHT):
    """logits_*: (B, T, V); targets_*: (B, T+1) int (first token sliced off);
    context_*: (B, T, C).  Inputs may be bf16; cast to f32 happens in-kernel."""
    loss_total = jnp.float32(0.0)

    V = logits_h.shape[-1]
    loss_h = _ce_pallas(logits_h.reshape(-1, V), targets_h[:, 1:].reshape(-1))
    loss_total = loss_total + loss_h

    V = logits_p.shape[-1]
    loss_p = _ce_pallas(logits_p.reshape(-1, V), targets_p[:, 1:].reshape(-1))
    loss_total = loss_total + loss_p

    if logits_up is not None and targets_up is not None:
        V = logits_up.shape[-1]
        loss_up = _ce_pallas(logits_up.reshape(-1, V),
                             targets_up[:, 1:].reshape(-1))
        loss_total = loss_total + loss_up
    else:
        loss_up = jnp.float32(0.0)

    if context_h is not None and context_p is not None:
        assert context_h.shape == context_p.shape
        match_loss = _mse_pallas(context_h, context_p)
        loss_total = loss_total + match_weight * match_loss
    else:
        match_loss = jnp.float32(0.0)

    # TODO(synk): PyTorch returns .item() (host floats) in the stats dict; we
    # return device scalars to avoid forced host syncs.
    stats = {"loss_h": loss_h, "loss_p": loss_p, "loss_up": loss_up,
             "match_loss": match_loss, "total": loss_total}
    return loss_total, stats


if __name__ == "__main__":
    key = jax.random.PRNGKey(0)
    B, T, V, C = 2, 8, 32, 16

    k = jax.random.split(key, 8)
    logits_h = jax.random.normal(k[0], (B, T, V), dtype=jnp.float32)
    logits_p = jax.random.normal(k[1], (B, T, V), dtype=jnp.float32)
    logits_up = jax.random.normal(k[2], (B, T, V), dtype=jnp.float32)
    # targets have an extra leading (BOS) position; module slices [:, 1:]
    targets_h = jax.random.randint(k[3], (B, T + 1), 0, V, dtype=jnp.int32)
    targets_p = jax.random.randint(k[4], (B, T + 1), 0, V, dtype=jnp.int32)
    targets_up = jax.random.randint(k[5], (B, T + 1), 0, V, dtype=jnp.int32)
    # force at least one ignored target so the ignore_index path is exercised
    targets_h = targets_h.at[0, 1].set(IGNORE_INDEX)
    context_h = jax.random.normal(k[6], (B, T, C), dtype=jnp.float32)
    context_p = jax.random.normal(k[7], (B, T, C), dtype=jnp.float32)

    total, stats = dual_loss(logits_h, targets_h, logits_p, targets_p,
                             logits_up, targets_up, context_h, context_p)
    jax.block_until_ready(total)

    # lightweight reference check in plain JAX
    def ce_ref(logits, tgt):
        lg = logits.reshape(-1, logits.shape[-1])
        t = tgt[:, 1:].reshape(-1)
        logp = jax.nn.log_softmax(lg, axis=-1)
        nll = -jnp.take_along_axis(logp, t[:, None], axis=-1)[:, 0]
        mask = (t != IGNORE_INDEX).astype(jnp.float32)
        return jnp.sum(nll * mask) / jnp.sum(mask)

    ref_total = (ce_ref(logits_h, targets_h) + ce_ref(logits_p, targets_p)
                 + ce_ref(logits_up, targets_up)
                 + MATCH_WEIGHT * jnp.mean((context_h - context_p) ** 2))
    assert jnp.allclose(total, ref_total, rtol=1e-5, atol=1e-5), (total, ref_total)

    # extra check: exercise vocab tiling, the tail-mask branch and ragged rows
    N2, V2 = 40, 320
    lg2 = jax.random.normal(jax.random.PRNGKey(1), (N2, V2), dtype=jnp.float32)
    tg2 = jax.random.randint(jax.random.PRNGKey(2), (N2,), 0, V2, dtype=jnp.int32)
    ce2 = _ce_pallas(lg2, tg2, v_tile_override=256)
    logp2 = jax.nn.log_softmax(lg2, axis=-1)
    nll2 = -jnp.take_along_axis(logp2, tg2[:, None], axis=-1)[:, 0]
    msk2 = (tg2 != IGNORE_INDEX).astype(jnp.float32)
    ref2 = jnp.sum(nll2 * msk2) / jnp.sum(msk2)
    jax.block_until_ready(ce2)
    assert jnp.allclose(ce2, ref2, rtol=1e-4, atol=1e-5), (ce2, ref2)

    print("KERNEL_OK")
</pallas_src>

<mosaic_0001>
module attributes {stable_mosaic.version = 11 : i64} {
  func.func @_ce_kernel(%arg0: i32, %arg1: i32, %arg2: memref<16x32xf32, #tpu.memory_space<vmem>>, %arg3: memref<16x1xi32, #tpu.memory_space<vmem>>, %arg4: memref<16x2xf32, #tpu.memory_space<vmem>>, %arg5: memref<16x1xf32, #tpu.memory_space<vmem>>, %arg6: memref<16x1xf32, #tpu.memory_space<vmem>>, %arg7: memref<16x1xf32, #tpu.memory_space<vmem>>) attributes {dimension_semantics = [#tpu.dimension_semantics<parallel>, #tpu.dimension_semantics<arbitrary>], iteration_bounds = array<i64: 1, 1>, scalar_prefetch = 0 : i64, scratch_operands = 3 : i64, tpu.core_type = #tpu.core_type<tc>, window_params = [{transform_indices = @transform_0, window_bounds = array<i64: 16, 32>}, {transform_indices = @transform_1, window_bounds = array<i64: 16, 1>}, {transform_indices = @transform_2, window_bounds = array<i64: 16, 2>}]} {
    %c0_i32 = arith.constant 0 : i32
    %0 = arith.cmpi eq, %arg1, %c0_i32 : i32
    %1 = arith.extui %0 : i1 to i32
    %c0_i32_0 = arith.constant 0 : i32
    %2 = arith.cmpi ne, %1, %c0_i32_0 : i32
    scf.if %2 {
      %cst_21 = arith.constant 0xFF800000 : f32
      %37 = vector.broadcast %cst_21 : f32 to vector<16x1xf32>
      %c0_22 = arith.constant 0 : index
      %c0_23 = arith.constant 0 : index
      %38 = vector.load %arg5[%c0_22, %c0_23] : memref<16x1xf32, #tpu.memory_space<vmem>>, vector<16x1xf32>
      tpu.vector_store %arg5[%c0_22, %c0_23], %37 {strides = array<i32>} : memref<16x1xf32, #tpu.memory_space<vmem>>, vector<16x1xf32>,
      %cst_24 = arith.constant 0.000000e+00 : f32
      %39 = vector.broadcast %cst_24 : f32 to vector<16x1xf32>
      %c0_25 = arith.constant 0 : index
      %c0_26 = arith.constant 0 : index
      %40 = vector.load %arg6[%c0_25, %c0_26] : memref<16x1xf32, #tpu.memory_space<vmem>>, vector<16x1xf32>
      tpu.vector_store %arg6[%c0_25, %c0_26], %39 {strides = array<i32>} : memref<16x1xf32, #tpu.memory_space<vmem>>, vector<16x1xf32>,
      %cst_27 = arith.constant 0.000000e+00 : f32
      %41 = vector.broadcast %cst_27 : f32 to vector<16x1xf32>
      %c0_28 = arith.constant 0 : index
      %c0_29 = arith.constant 0 : index
      %42 = vector.load %arg7[%c0_28, %c0_29] : memref<16x1xf32, #tpu.memory_space<vmem>>, vector<16x1xf32>
      tpu.vector_store %arg7[%c0_28, %c0_29], %41 {strides = array<i32>} : memref<16x1xf32, #tpu.memory_space<vmem>>, vector<16x1xf32>,
    } else {
    }
    %c0 = arith.constant 0 : index
    %c0_1 = arith.constant 0 : index
    %3 = vector.load %arg2[%c0, %c0_1] : memref<16x32xf32, #tpu.memory_space<vmem>>, vector<16x32xf32>
    %c0_2 = arith.constant 0 : index
    %c0_3 = arith.constant 0 : index
    %4 = vector.load %arg3[%c0_2, %c0_3] : memref<16x1xi32, #tpu.memory_space<vmem>>, vector<16x1xi32>
    %5 = tpu.iota {dimensions = array<i32: 1>} : vector<16x32xi32>
    %c32_i32 = arith.constant 32 : i32
    %6 = arith.muli %arg1, %c32_i32 : i32
    %7 = vector.broadcast %6 : i32 to vector<16x1xi32>
    %8 = arith.subi %4, %7 : vector<16x1xi32>
    %c0_4 = arith.constant 0 : index
    %c0_5 = arith.constant 0 : index
    %9 = vector.load %arg5[%c0_4, %c0_5] : memref<16x1xf32, #tpu.memory_space<vmem>>, vector<16x1xf32>
    %cst = arith.constant dense<0xFF800000> : vector<16xf32>
    %10 = vector.multi_reduction <maximumf>, %3, %cst [1] : vector<16x32xf32> to vector<16xf32>
    %11 = vector.shape_cast %10 : vector<16xf32> to vector<16x1xf32>
    %12 = arith.maximumf %9, %11 : vector<16x1xf32>
    %13 = arith.subf %9, %12 : vector<16x1xf32>
    %14 = math.exp %13 : vector<16x1xf32>
    %c0_6 = arith.constant 0 : index
    %c0_7 = arith.constant 0 : index
    %15 = vector.load %arg6[%c0_6, %c0_7] : memref<16x1xf32, #tpu.memory_space<vmem>>, vector<16x1xf32>
    %16 = arith.mulf %14, %15 : vector<16x1xf32>
    %17 = vector.broadcast %12 : vector<16x1xf32> to vector<16x32xf32>
    %18 = arith.subf %3, %17 : vector<16x32xf32>
    %19 = math.exp %18 : vector<16x32xf32>
    %cst_8 = arith.constant dense<0.000000e+00> : vector<16xf32>
    %20 = vector.multi_reduction <add>, %19, %cst_8 [1] : vector<16x32xf32> to vector<16xf32>
    %21 = vector.shape_cast %20 : vector<16xf32> to vector<16x1xf32>
    %22 = arith.addf %16, %21 : vector<16x1xf32>
    %c0_9 = arith.constant 0 : index
    %c0_10 = arith.constant 0 : index
    %23 = vector.load %arg6[%c0_9, %c0_10] : memref<16x1xf32, #tpu.memory_space<vmem>>, vector<16x1xf32>
    tpu.vector_store %arg6[%c0_9, %c0_10], %22 {strides = array<i32>} : memref<16x1xf32, #tpu.memory_space<vmem>>, vector<16x1xf32>,
    %c0_11 = arith.constant 0 : index
    %c0_12 = arith.constant 0 : index
    %24 = vector.load %arg5[%c0_11, %c0_12] : memref<16x1xf32, #tpu.memory_space<vmem>>, vector<16x1xf32>
    tpu.vector_store %arg5[%c0_11, %c0_12], %12 {strides = array<i32>} : memref<16x1xf32, #tpu.memory_space<vmem>>, vector<16x1xf32>,
    %c0_13 = arith.constant 0 : index
    %c0_14 = arith.constant 0 : index
    %25 = vector.load %arg7[%c0_13, %c0_14] : memref<16x1xf32, #tpu.memory_space<vmem>>, vector<16x1xf32>
    %26 = vector.broadcast %8 : vector<16x1xi32> to vector<16x32xi32>
    %27 = arith.cmpi eq, %5, %26 : vector<16x32xi32>
    %cst_15 = arith.constant 0.000000e+00 : f32
    %28 = vector.broadcast %cst_15 : f32 to vector<16x32xf32>
    %29 = arith.select %27, %3, %28 : vector<16x32xi1>, vector<16x32xf32>
    %cst_16 = arith.constant dense<0.000000e+00> : vector<16xf32>
    %30 = vector.multi_reduction <add>, %29, %cst_16 [1] : vector<16x32xf32> to vector<16xf32>
    %31 = vector.shape_cast %30 : vector<16xf32> to vector<16x1xf32>
    %32 = arith.addf %25, %31 : vector<16x1xf32>
    %c0_17 = arith.constant 0 : index
    %c0_18 = arith.constant 0 : index
    %33 = vector.load %arg7[%c0_17, %c0_18] : memref<16x1xf32, #tpu.memory_space<vmem>>, vector<16x1xf32>
    tpu.vector_store %arg7[%c0_17, %c0_18], %32 {strides = array<i32>} : memref<16x1xf32, #tpu.memory_space<vmem>>, vector<16x1xf32>,
    %c0_i32_19 = arith.constant 0 : i32
    %34 = arith.cmpi eq, %arg1, %c0_i32_19 : i32
    %35 = arith.extui %34 : i1 to i32
    %c0_i32_20 = arith.constant 0 : i32
    %36 = arith.cmpi ne, %35, %c0_i32_20 : i32
    scf.if %36 {
      %c16_i32 = arith.constant 16 : i32
      %37 = arith.muli %arg0, %c16_i32 : i32
      %38 = tpu.iota {dimensions = array<i32: 0>} : vector<16x1xi32>
      %39 = vector.broadcast %37 : i32 to vector<16x1xi32>
      %40 = arith.addi %39, %38 : vector<16x1xi32>
      %c16_i32_21 = arith.constant 16 : i32
      %41 = vector.broadcast %c16_i32_21 : i32 to vector<16x1xi32>
      %42 = arith.cmpi slt, %40, %41 : vector<16x1xi32>
      %c0_i32_22 = arith.constant 0 : i32
      %43 = vector.broadcast %c0_i32_22 : i32 to vector<16x1xi32>
      %44 = arith.cmpi ne, %4, %43 : vector<16x1xi32>
      %45 = arith.andi %42, %44 : vector<16x1xi1>
      %c0_23 = arith.constant 0 : index
      %c0_24 = arith.constant 0 : index
      %46 = vector.load %arg5[%c0_23, %c0_24] : memref<16x1xf32, #tpu.memory_space<vmem>>, vector<16x1xf32>
      %c0_25 = arith.constant 0 : index
      %c0_26 = arith.constant 0 : index
      %47 = vector.load %arg6[%c0_25, %c0_26] : memref<16x1xf32, #tpu.memory_space<vmem>>, vector<16x1xf32>
      %48 = math.log %47 : vector<16x1xf32>
      %49 = arith.addf %46, %48 : vector<16x1xf32>
      %c0_27 = arith.constant 0 : index
      %c0_28 = arith.constant 0 : index
      %50 = vector.load %arg7[%c0_27, %c0_28] : memref<16x1xf32, #tpu.memory_space<vmem>>, vector<16x1xf32>
      %51 = arith.subf %49, %50 : vector<16x1xf32>
      %cst_29 = arith.constant 0.000000e+00 : f32
      %52 = vector.broadcast %cst_29 : f32 to vector<16x1xf32>
      %53 = arith.select %45, %51, %52 : vector<16x1xi1>, vector<16x1xf32>
      %c0_30 = arith.constant 0 : index
      %c0_31 = arith.constant 0 : index
      %54 = vector.load %arg4[%c0_30, %c0_31] : memref<16x2xf32, #tpu.memory_space<vmem>>, vector<16x1xf32>
      tpu.vector_store %arg4[%c0_30, %c0_31], %53 {strides = array<i32>} : memref<16x2xf32, #tpu.memory_space<vmem>>, vector<16x1xf32>,
      %55 = arith.extui %45 : vector<16x1xi1> to vector<16x1xi32>
      %56 = arith.sitofp %55 : vector<16x1xi32> to vector<16x1xf32>
      %c0_32 = arith.constant 0 : index
      %c1 = arith.constant 1 : index
      %57 = vector.load %arg4[%c0_32, %c1] : memref<16x2xf32, #tpu.memory_space<vmem>>, vector<16x1xf32>
      tpu.vector_store %arg4[%c0_32, %c1], %56 {strides = array<i32>} : memref<16x2xf32, #tpu.memory_space<vmem>>, vector<16x1xf32>,
    } else {
    }
    return
  }
  func.func @transform_0(%arg0: i32, %arg1: i32) -> (i32, i32) {
    %c0_i32 = arith.constant 0 : i32
    return %arg0, %arg1 : i32, i32
  }
  func.func @transform_1(%arg0: i32, %arg1: i32) -> (i32, i32) {
    %c0_i32 = arith.constant 0 : i32
    %c0_i32_0 = arith.constant 0 : i32
    return %arg0, %c0_i32 : i32, i32
  }
  func.func @transform_2(%arg0: i32, %arg1: i32) -> (i32, i32) {
    %c0_i32 = arith.constant 0 : i32
    %c0_i32_0 = arith.constant 0 : i32
    return %arg0, %c0_i32 : i32, i32
  }
}

</mosaic_0001>

<llo_original>
// kernel: tpu_custom_call.1
$region0: #{tpu_custom_call.1}
  #allocation0 [shape = 'u32[]', space=smem, size = 0x4, offset = 0x4, fixed_abs, tag = 'smem constant byte address 0x4 - core index']
  #allocation1 [shape = 'u32[144,128]{1,0:T(1,128)}', space=vmem, size = 0x12000, scoped, tag = 'internal scratch']
  #allocation2 [shape = 'f32[16,1]{1,0:T(8,128)}', space=vmem, size = 0x2000, scoped, tag = 'scratch operand']
  #allocation3 [shape = 'f32[16,1]{1,0:T(8,128)}', space=vmem, size = 0x2000, scoped, tag = 'scratch operand']
  #allocation4 [shape = 'f32[16,1]{1,0:T(8,128)}', space=vmem, size = 0x2000, scoped, tag = 'scratch operand']
  %s0 = inlined_call_operand.vmem [shape: f32[16,32], index: 0, kind: input, shape index: {}]
  %s1 = inlined_call_operand.vmem [shape: s32[16,1], index: 1, kind: input, shape index: {}]
  %s2 = inlined_call_operand.vmem [shape: f32[16,2], index: 2, kind: output, shape index: {}]
  %s3 = sld [smem:[#allocation0]]
  $region26: #{tpu_custom_call.1} parent=0
    _
  %s5 = ssub.s32 1, %s3
  %s6 = scalar_select 0, %s5, %s3
  // Predicated region
  $region2: #{tpu_custom_call.1} parent=0 // pred_check
    _
  $region3: #{tpu_custom_call.1} parent=0 // pred_check_branch
    %8 = sbr.rel (0) target = $region5
  $region4: #{tpu_custom_call.1} parent=0 // pred_region
    _
  $region5: #{tpu_custom_call.1} parent=0 // pred_fallthru
    _
  // Predicated region
  $region6: #{tpu_custom_call.1} parent=0 // pred_check
    _
  $region7: #{tpu_custom_call.1} parent=0 // pred_check_branch
    %10 = sbr.rel (0) target = $region9
  $region8: #{tpu_custom_call.1} parent=0 // pred_region
    _
  $region9: #{tpu_custom_call.1} parent=0 // pred_fallthru
    _
  %p11 = scmp.eq.s32.totalorder 0, 0
  // Predicated region
  $region10: #{tpu_custom_call.1} parent=0 // pred_check
    %p12 = pneg %p11
  $region11: #{tpu_custom_call.1} parent=0 // pred_check_branch
    %14 = sbr.rel (%p12) target = $region13
  $region12: #{tpu_custom_call.1} parent=0 // pred_region
    %vm15 = vcmask 7168
    %16 = vst.msk [vmem:[#allocation2] sm:$0xff] %vm15, -inf
    %17 = vst.msk [vmem:[#allocation2 + $0x8] sm:$0xff] %vm15, -inf
    %18 = vst.msk [vmem:[#allocation3] sm:$0xff] %vm15, 0.0
    %19 = vst.msk [vmem:[#allocation3 + $0x8] sm:$0xff] %vm15, 0.0
    %20 = vst.msk [vmem:[#allocation4] sm:$0xff] %vm15, 0.0
    %21 = vst.msk [vmem:[#allocation4 + $0x8] sm:$0xff] %vm15, 0.0
  $region13: #{tpu_custom_call.1} parent=0 // pred_fallthru
    _
  %v22 = vld [vmem:[%s0] sm:$0xff]
  %v23 = vld [vmem:[%s0 + $0x8] sm:$0xff]
  %v24 = vld [vmem:[%s1] sm:$0xff]
  %v25 = vld [vmem:[%s1 + $0x8] sm:$0xff]
  %v26 = vlaneseq
  %v27 = vand.u32 %v26, 127
  %s28 = smul.u32 0, 32
  %v29 = vstv %s28
  %v30 = vsub.s32 %v24, %v29
  %v31 = vsub.s32 %v25, %v29
  %v32 = vld [vmem:[#allocation2] sm:$0xff]
  %v33 = vld [vmem:[#allocation2 + $0x8] sm:$0xff]
  %vm34 = vcmask 261120
  %v35 = vsel %vm34, %v22, -inf
  %36 = vmax.xlane.f32.xlu0 %v35
  %v37 = vpop.xlane.xlu0 %36
  %v38 = vsel %vm34, %v23, -inf
  %39 = vmax.xlane.f32.xlu0 %v38
  %v40 = vpop.xlane.xlu0 %39
  %v41 = vmax.f32 %v32, %v37
  %v42 = vmax.f32 %v33, %v40
  %v43 = vsub.f32 %v32, %v41
  %v44 = vsub.f32 %v33, %v42
  %v45 = vmul.f32 %v43, 1.442695
  %v46 = vpow.pop %v45
  %v47 = vmul.f32 %v44, 1.442695
  %v48 = vpow.pop %v47
  %v49 = vld [vmem:[#allocation3] sm:$0xff]
  %v50 = vld [vmem:[#allocation3 + $0x8] sm:$0xff]
  %v51 = vmul.f32 %v46, %v49
  %v52 = vmul.f32 %v48, %v50
  %54 = vset.pattern.permute.xlu0 0
  %55 = vperm.xlu0 %54, %v41
  %v56 = vpop.permute.xlu0 %55
  %59 = vset.pattern.permute.xlu0 0
  %60 = vperm.xlu0 %59, %v42
  %v61 = vpop.permute.xlu0 %60
  %v63 = vsub.f32 %v22, %v56
  %v64 = vsub.f32 %v23, %v61
  %v65 = vmul.f32 %v63, 1.442695
  %v66 = vpow.pop %v65
  %v67 = vmul.f32 %v64, 1.442695
  %v68 = vpow.pop %v67
  %v69 = vsel %vm34, %v66, 0.0
  %70 = vadd.xlane.f32.xlu0 %v69
  %v71 = vpop.xlane.xlu0 %70
  %v72 = vsel %vm34, %v68, 0.0
  %73 = vadd.xlane.f32.xlu0 %v72
  %v74 = vpop.xlane.xlu0 %73
  %v75 = vadd.f32 %v51, %v71
  %v76 = vadd.f32 %v52, %v74
  %vm77 = vcmask 7168
  %78 = vst.msk [vmem:[#allocation3] sm:$0xff] %vm77, %v75
  %79 = vst.msk [vmem:[#allocation3 + $0x8] sm:$0xff] %vm77, %v76
  %80 = vst.msk [vmem:[#allocation2] sm:$0xff] %vm77, %v41
  %81 = vst.msk [vmem:[#allocation2 + $0x8] sm:$0xff] %vm77, %v42
  %v82 = vld [vmem:[#allocation4] sm:$0xff]
  %v83 = vld [vmem:[#allocation4 + $0x8] sm:$0xff]
  %84 = vset.pattern.permute.xlu0 0
  %85 = vperm.xlu0 %84, %v30
  %v86 = vpop.permute.xlu0 %85
  %87 = vset.pattern.permute.xlu0 0
  %88 = vperm.xlu0 %87, %v31
  %v89 = vpop.permute.xlu0 %88
  %vm90 = vcmp.eq.s32.totalorder %v27, %v86
  %vm91 = vcmp.eq.s32.totalorder %v27, %v89
  %v92 = vsel %vm90, %v22, 0.0
  %v93 = vsel %vm91, %v23, 0.0
  %v94 = vsel %vm34, %v92, 0.0
  %95 = vadd.xlane.f32.xlu0 %v94
  %v96 = vpop.xlane.xlu0 %95
  %v97 = vsel %vm34, %v93, 0.0
  %98 = vadd.xlane.f32.xlu0 %v97
  %v99 = vpop.xlane.xlu0 %98
  %v100 = vadd.f32 %v82, %v96
  %v101 = vadd.f32 %v83, %v99
  %102 = vst.msk [vmem:[#allocation4] sm:$0xff] %vm77, %v100
  %103 = vst.msk [vmem:[#allocation4 + $0x8] sm:$0xff] %vm77, %v101
  // Predicated region
  $region14: #{tpu_custom_call.1} parent=0 // pred_check
    %p104 = pneg %p11
  $region15: #{tpu_custom_call.1} parent=0 // pred_check_branch
    %106 = sbr.rel (%p104) target = $region17
  $region16: #{tpu_custom_call.1} parent=0 // pred_region
    %s107 = smul.u32 0, 16
    %v108 = vlaneseq
    %v109 = vshrl.u32 %v108, 7
    %v110 = vadd.s32 %v109, 8
    %v111 = vstv %s107
    %v112 = vadd.s32 %v111, %v109
    %v113 = vadd.s32 %v111, %v110
    %vm114 = vcmp.lt.s32.totalorder %v112, 16
    %vm115 = vcmp.lt.s32.totalorder %v113, 16
    %vm116 = vcmp.ne.s32.totalorder %v24, 0
    %vm117 = vcmp.ne.s32.totalorder %v25, 0
    %vm118 = vmand %vm114, %vm116
    %vm119 = vmand %vm115, %vm117
    %v120 = vld [vmem:[#allocation2] sm:$0xff]
    %v121 = vld [vmem:[#allocation2 + $0x8] sm:$0xff]
    %v122 = vld [vmem:[#allocation3] sm:$0xff]
    %v123 = vld [vmem:[#allocation3 + $0x8] sm:$0xff]
    %v124 = vlog2.pop %v122
    %v125 = vmul.f32 %v124, 0.6931472
    %v126 = vlog2.pop %v123
    %v127 = vmul.f32 %v126, 0.6931472
    %v128 = vadd.f32 %v120, %v125
    %v129 = vadd.f32 %v121, %v127
    %v130 = vld [vmem:[#allocation4] sm:$0xff]
    %v131 = vld [vmem:[#allocation4 + $0x8] sm:$0xff]
    %v132 = vsub.f32 %v128, %v130
    %v133 = vsub.f32 %v129, %v131
    %v134 = vsel %vm118, %v132, 0.0
    %v135 = vsel %vm119, %v133, 0.0
    %136 = vst.msk [vmem:[%s2] sm:$0xff] %vm77, %v134
    %137 = vst.msk [vmem:[%s2 + $0x8] sm:$0xff] %vm77, %v135
    %v138 = vsel %vm118, 1, 0
    %v139 = vsel %vm119, 1, 0
    %v140 = vcvt.s32.f32 %v138
    %v141 = vcvt.s32.f32 %v139
    %144 = vrot.lane.b32.xlu0 %v140, 1
    %v145 = vpop.permute.xlu0 %144
    %146 = vrot.lane.b32.xlu0 %v141, 1
    %v147 = vpop.permute.xlu0 %146
    %vm150 = vcmask 15368
    %151 = vst.msk [vmem:[%s2] sm:$0xff] %vm150, %v145
    %152 = vst.msk [vmem:[%s2 + $0x8] sm:$0xff] %vm150, %v147
  $region17: #{tpu_custom_call.1} parent=0 // pred_fallthru
    _
  // Predicated region
  $region18: #{tpu_custom_call.1} parent=0 // pred_check
    _
  $region19: #{tpu_custom_call.1} parent=0 // pred_check_branch
    %154 = sbr.rel (0) target = $region21
  $region20: #{tpu_custom_call.1} parent=0 // pred_region
    _
  $region21: #{tpu_custom_call.1} parent=0 // pred_fallthru
    _
  // Predicated region
  $region22: #{tpu_custom_call.1} parent=0 // pred_check
    _
  $region23: #{tpu_custom_call.1} parent=0 // pred_check_branch
    %156 = sbr.rel (0) target = $region25
  $region24: #{tpu_custom_call.1} parent=0 // pred_region
    _
  $region25: #{tpu_custom_call.1} parent=0 // pred_fallthru
    _

</llo_original>
